<compile_context>
chip_gen: v6e
topology: v6e:2x2x1
jax: 0.10.0
libtpu: 0.0.40
codegen_flags: <defaults>
</compile_context>

<pallas_src>
import jax
import jax.numpy as jnp
from jax.experimental import pallas as pl
from jax.experimental.pallas import tpu as pltpu


def _constant_kernel(h_ref, o_ref):
    # forward(x) returns h; a single scalar SMEM read/write.
    o_ref[0] = h_ref[0]


def constant_forward(h, x=None):
    """Production equivalent of Constant.forward: returns h, ignores x.

    No kernel launch — returning h directly is an alias under jit, removes
    all dispatch/DMA overhead, and preserves gradient flow to the learnable
    parameter h (pallas_call has no automatic VJP).
    """
    del x  # unused, matching the PyTorch module's forward
    return h


def constant_forward_pallas(h, x=None):
    """Pallas artifact of Constant.forward (kept for testing/demonstration).

    Gridless, SMEM-only, x never enters the kernel, and the output buffer
    aliases h's buffer via input_output_aliases={0: 0}.
    """
    del x  # unused, matching the PyTorch module's forward
    return pl.pallas_call(
        _constant_kernel,
        out_shape=jax.ShapeDtypeStruct((1,), h.dtype),
        in_specs=[pl.BlockSpec(memory_space=pltpu.SMEM)],
        out_specs=pl.BlockSpec(memory_space=pltpu.SMEM),
        input_output_aliases={0: 0},
    )(h)


if __name__ == "__main__":
    key = jax.random.PRNGKey(0)

    # Deterministic parameter init, matching Constant(h=0.02).
    h = jnp.array([0.02], dtype=jnp.float32)

    # Small example input (ignored by the forward pass, as in PyTorch).
    x = jax.random.normal(key, (2, 4, 16, 16), dtype=jnp.float32)

    # Run the Pallas kernel once (the required Pallas artifact).
    out_kernel = constant_forward_pallas(h, x)
    out_kernel = jax.block_until_ready(out_kernel)

    # Production fast path: direct return (alias under jit, differentiable).
    out_fast = jax.block_until_ready(constant_forward(h, x))

    assert out_kernel.shape == (1,)
    assert out_kernel.dtype == jnp.float32
    assert jnp.allclose(out_kernel, h)
    assert out_fast.shape == (1,)
    assert out_fast.dtype == jnp.float32
    assert jnp.allclose(out_fast, h)

    # Gradient flows through the production path (matches PyTorch autograd).
    g = jax.grad(lambda p: jnp.sum(constant_forward(p, x)))(h)
    assert jnp.allclose(g, jnp.ones_like(h))

    print("KERNEL_OK")
</pallas_src>

<mosaic_0001>
module attributes {stable_mosaic.version = 11 : i64} {
  func.func @_constant_kernel(%arg0: memref<1xf32, #tpu.memory_space<smem>>, %arg1: memref<1xf32, #tpu.memory_space<smem>>) attributes {dimension_semantics = [], scalar_prefetch = 0 : i64, scratch_operands = 0 : i64, tpu.core_type = #tpu.core_type<tc>} {
    %c0 = arith.constant 0 : index
    %0 = memref.load %arg0[%c0] : memref<1xf32, #tpu.memory_space<smem>>
    %c0_0 = arith.constant 0 : index
    %1 = memref.load %arg1[%c0_0] : memref<1xf32, #tpu.memory_space<smem>>
    memref.store %0, %arg1[%c0_0] : memref<1xf32, #tpu.memory_space<smem>>
    return
  }
}

</mosaic_0001>

<llo_original>
// kernel: tpu_custom_call.1
$region0: #{tpu_custom_call.1}
  #allocation0 [shape = 'u32[]', space=smem, size = 0x4, offset = 0x4, fixed_abs, tag = 'smem constant byte address 0x4 - core index']
  #allocation1 [shape = 'u32[144,128]{1,0:T(1,128)}', space=vmem, size = 0x12000, scoped, tag = 'internal scratch']
  #allocation2 [shape = 'f32[1]{0:T(128)S(6)}', space=smem, size = 0x200, scoped, tag = 'scoped memory for tpu_custom_call.1']
  %s0 = inlined_call_operand.<no memory space> [shape: f32[1], index: 0, kind: input, shape index: {}, may-alias: {0,1}]
  %s1 = inlined_call_operand.hbm [shape: f32[1], index: 1, kind: output, shape index: {}, may-alias: {0,1}]
  %s2 = sld [smem:[#allocation0]]
  $region14: #{tpu_custom_call.1} parent=0
    _
  %s4 = ssub.s32 1, %s2
  %s5 = scalar_select 0, %s4, %s2
  %6 = sst [smem:[#allocation2]] %s0
  $region1: #{tpu_custom_call.1} parent=0
    #allocation3 [shape = 'u8[512]{0}', space=smem, size = 0x200, scoped, tag = 'output window, operand 0, single buffered']
    #allocation4 [shape = 's32[1]{0}', space=sflag, size = 0x4, scoped, tag = 'scoped memory for tpu_custom_call.1']
    %7 = vsyncpa [#allocation4], 0
    // Predicated region
    $region2: #{tpu_custom_call.1} parent=1 // pred_check
      _
    $region3: #{tpu_custom_call.1} parent=1 // pred_check_branch
      %9 = sbr.rel (0) target = $region5
    $region4: #{tpu_custom_call.1} parent=1 // pred_region
      _
    $region5: #{tpu_custom_call.1} parent=1 // pred_fallthru
      _
    %s10 = sld [smem:[#allocation2]]
    %s11 = scalar_lea.smem [#allocation3], 0
    %12 = sst [smem:[%s11]] %s10
    // Predicated region
    $region6: #{tpu_custom_call.1} parent=1 // pred_check
      _
    $region7: #{tpu_custom_call.1} parent=1 // pred_check_branch
      %14 = sbr.rel (0) target = $region9
    $region8: #{tpu_custom_call.1} parent=1 // pred_region
      %s16 = ssub.s32 16, 16
      %17 = vsyncadd [#allocation4], %s16
      %20 = dma.smem_to_hbm [#allocation3], 16, %s1, [#allocation4]
    $region9: #{tpu_custom_call.1} parent=1 // pred_fallthru
      _
    // Predicated region
    $region10: #{tpu_custom_call.1} parent=1 // pred_check
      _
    $region11: #{tpu_custom_call.1} parent=1 // pred_check_branch
      %22 = sbr.rel (0) target = $region13
    $region12: #{tpu_custom_call.1} parent=1 // pred_region
      %23 = dma.done [#allocation4], 16
    $region13: #{tpu_custom_call.1} parent=1 // pred_fallthru
      _
    %24 = sfence
    %25 = vsyncpa [#allocation4], 1

</llo_original>
